<compile_context>
chip_gen: v7x
topology: tpu7x:2x2x1
jax: 0.10.0
libtpu: 0.0.40
codegen_flags: <defaults>
</compile_context>

<pallas_src>
import jax
import jax.numpy as jnp
import numpy as np
from jax import lax
from jax.experimental import pallas as pl
from jax.experimental.pallas import tpu as pltpu

# ---------------------------------------------------------------------------
# Network configuration (small shapes implied by the module signature)
# ---------------------------------------------------------------------------
B = 2
WINDOW = 8            # window_size
HORIZON = 4           # forecasting_horizon
D_IN_PAST = 4         # d_input_past
D_IN_FUT = 3          # d_input_future
D_MODEL = 32          # d_model
D_OUT = 2             # d_output
N_CELLS_SEQ = 2
N_PRIM_ENC_SEQ = 3    # len(PRIMITIVES_encoder_seq)
N_PRIM_DEC_SEQ = 3    # len(PRIMITIVES_decoder_seq)
N_HEADS = 2           # len(HEADs)
N_PRIM_ENC_FLAT = 3   # len(PRIMITIVES_encoder_flat)
N_EDGES_SEQ = 3       # n_nodes_seq=2, n_cell_input_nodes_seq=1 -> 1 + 2
N_EDGES_FLAT = 3
DECOMP_KERNEL = 25    # series_decomp(25)
FORECAST_ONLY_SEQ = False
FORECAST_ONLY_FLAT = True

_HIGHEST = lax.Precision.HIGHEST


# ---------------------------------------------------------------------------
# series_decomp(25) as a constant (T, T) averaging matrix:
# mean = A @ x  ==  AvgPool1d(k, stride=1) over replicate-padded x (time axis).
# ---------------------------------------------------------------------------
def _moving_average_matrix(t, k):
    pad = (k - 1) // 2
    a = np.zeros((t, t), np.float32)
    for i in range(t):
        for j in range(k):
            a[i, min(max(i + j - pad, 0), t - 1)] += 1.0 / k
    return a


_MA_MATRIX = _moving_average_matrix(WINDOW, DECOMP_KERNEL)            # (W, W)
# seasonal = (I - A) @ x_past, per batch -> constant block-diag matrix.
_SEAS_BD = np.kron(np.eye(B, dtype=np.float32),
                   np.eye(WINDOW, dtype=np.float32) - _MA_MATRIX)     # (B*W, B*W)
# "broadcast encoder output at t = W-1 over the H decoder steps" as a matmul.
_SEL = np.zeros((HORIZON, WINDOW), np.float32)
_SEL[:, WINDOW - 1] = 1.0
_SEL_BD = np.kron(np.eye(B, dtype=np.float32), _SEL)                  # (B*H, B*W)


# ---------------------------------------------------------------------------
# Packed-slab layout: one f32 (rows, 32) buffer, 8-row aligned static offsets.
# ---------------------------------------------------------------------------
_SLAB_LANES = D_MODEL  # 32

_SLAB_LAYOUT = [  # (name, rows, cols)
    ("xp",       B * WINDOW, D_IN_PAST),       # x_past, batch-flattened
    ("xf",       B * HORIZON, D_IN_FUT),       # x_future, batch-flattened
    ("seas_bd",  B * WINDOW, B * WINDOW),      # block-diag (I - A)
    ("sel_last", B * HORIZON, B * WINDOW),     # encoder-last selector
    ("w_enc",    D_IN_PAST, D_MODEL),          # pre-mixed seq encoder
    ("b_enc",    1, D_MODEL),
    ("w_ce",     N_CELLS_SEQ * D_MODEL, D_MODEL),
    ("b_ce",     N_CELLS_SEQ, D_MODEL),
    ("w_dec",    D_IN_FUT, D_MODEL),           # pre-mixed seq decoder
    ("b_dec",    1, D_MODEL),
    ("w_cd",     N_CELLS_SEQ * D_MODEL, D_MODEL),
    ("b_cd",     N_CELLS_SEQ, D_MODEL),
    ("w_hs_bc",  D_MODEL, D_OUT),              # seq head (backcast, unscaled)
    ("b_hs_bc",  1, D_OUT),
    ("w_hs_fc",  D_MODEL, D_OUT),              # seq head * w0 (forecast)
    ("b_hs_fc",  1, D_OUT),
    ("w_ft_bd",  B * HORIZON, B * WINDOW),     # folded flat branch * w1 (block-diag)
    ("b_ft",     B * HORIZON, 1),
]


def _align8(n):
    return (n + 7) // 8 * 8


def _build_offsets():
    offs, r = {}, 0
    for name, rows, cols in _SLAB_LAYOUT:
        offs[name] = (r, rows, cols)
        r += _align8(rows)
    return offs, r


_SLAB_OFFS, _SLAB_ROWS = _build_offsets()


def _pack_slab(pieces):
    parts = []
    for name, rows, cols in _SLAB_LAYOUT:
        t = pieces[name].astype(jnp.float32).reshape(rows, cols)
        pad_r = _align8(rows) - rows
        pad_c = _SLAB_LANES - cols
        if pad_r or pad_c:
            t = jnp.pad(t, ((0, pad_r), (0, pad_c)))
        parts.append(t)
    return jnp.concatenate(parts, axis=0)          # (_SLAB_ROWS, 32), one DMA


# Advisory cost estimate (rank-2 matmuls only; elementwise work is negligible).
_MM_SHAPES = (
    [(B * WINDOW, B * WINDOW, D_IN_PAST),          # seasonal = (I-A) x
     (B * WINDOW, D_IN_PAST, D_MODEL)]             # seq encoder
    + [(B * WINDOW, D_MODEL, D_MODEL)] * N_CELLS_SEQ
    + [(B * HORIZON, D_IN_FUT, D_MODEL),           # seq decoder
       (B * HORIZON, B * WINDOW, D_MODEL)]         # encoder-last selector
    + [(B * HORIZON, D_MODEL, D_MODEL)] * N_CELLS_SEQ
    + [(B * WINDOW, D_MODEL, D_OUT),               # backcast head
       (B * HORIZON, D_MODEL, D_OUT),              # forecast head
       (B * HORIZON, B * WINDOW, D_OUT)]           # folded flat branch
)
_FLOPS = int(sum(2 * m * k * n for m, k, n in _MM_SHAPES))
_BYTES = int((_SLAB_ROWS * _SLAB_LANES + B * (WINDOW + HORIZON) * D_OUT) * 4)


# ---------------------------------------------------------------------------
# Fused forward kernel — runs once (no grid); single slab in, single slab out.
# Pure chain of rank-2 MXU dots; no in-kernel reshape/transpose/broadcast_to.
# ---------------------------------------------------------------------------
def _fused_forward_kernel(slab_ref, out_ref):
    f32 = jnp.float32

    def g(name):                                   # static slice of the slab
        r, rows, cols = _SLAB_OFFS[name]
        return slab_ref[r:r + rows, :cols]

    def mm(a, b):                                  # rank-2 MXU matmul
        return jnp.dot(a, b, preferred_element_type=f32)

    xp = g("xp")                                   # (B*W, Dp)
    xf = g("xf")                                   # (B*H, Df)

    # ---- series_decomp(25): seasonal = (I - A) x, as one block-diag matmul --
    seasonal = mm(g("seas_bd"), xp)                # (B*W, Dp)

    # ---- seq net: pre-mixed encoder + residual ReLU cells -------------------
    # TODO(synk): SearchDARTSEncoder/Decoder cell graphs (get_encoder /
    # get_decoder are NotImplementedError in the abstract base); every DARTS
    # mixed edge is realized as an affine op and pre-mixed in the wrapper.
    h = mm(seasonal, g("w_enc")) + g("b_enc")      # (B*W, Dm)
    w_ce, b_ce = g("w_ce"), g("b_ce")
    for c in range(N_CELLS_SEQ):                   # static unroll
        h = h + jnp.maximum(
            mm(h, w_ce[c * D_MODEL:(c + 1) * D_MODEL, :]) + b_ce[c:c + 1, :], 0.0)
    enc = h                                        # net_encoder_out, (B*W, Dm)

    # ---- seq decoder: x_future + encoder last step (selector matmul) --------
    hf = mm(xf, g("w_dec")) + g("b_dec") + mm(g("sel_last"), enc)   # (B*H, Dm)
    w_cd, b_cd = g("w_cd"), g("b_cd")
    for c in range(N_CELLS_SEQ):
        hf = hf + jnp.maximum(
            mm(hf, w_cd[c * D_MODEL:(c + 1) * D_MODEL, :]) + b_cd[c:c + 1, :], 0.0)

    # ---- heads: forecast head pre-scaled by arch_p_net w0, backcast unscaled
    bc = mm(enc, g("w_hs_bc")) + g("b_hs_bc")      # (B*W, Do)
    fc = mm(hf, g("w_hs_fc")) + g("b_hs_fc")       # (B*H, Do)

    # ---- flat net: decomp + flat mixer(forecast rows) + flat head + w1 ------
    # fully folded (all affine) into one block-diag map over the target channels
    fc = fc + mm(g("w_ft_bd"), xp[:, :D_OUT]) + g("b_ft")           # (B*H, Do)

    # ---- merged output: rows [backcast (B*W) ; forecast (B*H)] --------------
    out_ref[...] = jnp.concatenate([bc, fc], axis=0)


# ---------------------------------------------------------------------------
# Parameters
# ---------------------------------------------------------------------------
def init_params(key):
    ks = jax.random.split(key, 12)
    s = 0.1
    p = {
        "W_enc_seq": s * jax.random.normal(ks[0], (N_PRIM_ENC_SEQ, D_IN_PAST, D_MODEL)),
        "b_enc_seq": s * jax.random.normal(ks[1], (N_PRIM_ENC_SEQ, D_MODEL)),
        "W_cell_enc": s * jax.random.normal(ks[2], (N_CELLS_SEQ, D_MODEL, D_MODEL)),
        "b_cell_enc": s * jax.random.normal(ks[3], (N_CELLS_SEQ, D_MODEL)),
        "W_dec_seq": s * jax.random.normal(ks[4], (N_PRIM_DEC_SEQ, D_IN_FUT, D_MODEL)),
        "b_dec_seq": s * jax.random.normal(ks[5], (N_PRIM_DEC_SEQ, D_MODEL)),
        "W_cell_dec": s * jax.random.normal(ks[6], (N_CELLS_SEQ, D_MODEL, D_MODEL)),
        "b_cell_dec": s * jax.random.normal(ks[7], (N_CELLS_SEQ, D_MODEL)),
        "W_head_seq": s * jax.random.normal(ks[8], (N_HEADS, D_MODEL, D_OUT)),
        "b_head_seq": s * jax.random.normal(ks[9], (N_HEADS, D_OUT)),
        "W_flat": s * jax.random.normal(ks[10], (N_PRIM_ENC_FLAT, WINDOW, WINDOW + HORIZON)),
        "b_flat": s * jax.random.normal(ks[11], (N_PRIM_ENC_FLAT, WINDOW + HORIZON)),
        "W_head_flat": s * jax.random.normal(ks[0], (N_HEADS, HORIZON, HORIZON)),
        "b_head_flat": s * jax.random.normal(ks[1], (N_HEADS, HORIZON)),
    }
    return jax.tree_util.tree_map(lambda a: a.astype(jnp.float32), p)


def _premix(mix_w, w_stack, b_stack):
    """Mixed-op linearity: sum_p w_p (x W_p + b_p) == x (sum_p w_p W_p) + sum_p w_p b_p."""
    w = jnp.einsum('p,pkn->kn', mix_w, w_stack, precision=_HIGHEST)
    b = jnp.einsum('p,pn->n', mix_w, b_stack, precision=_HIGHEST)
    return w.astype(jnp.float32), b.astype(jnp.float32)


# ---------------------------------------------------------------------------
# Forward wrapper: pre-mix / fold all DARTS weights, pack one slab, one call.
# ---------------------------------------------------------------------------
@jax.jit
def mixed_net_forward(params, x_past, x_future,
                      arch_p_encoder_seq, arch_p_decoder_seq, arch_p_heads_seq,
                      arch_p_encoder_flat, arch_p_heads_flat,
                      arch_p_decoder_choices_seq, arch_p_net):
    # TODO(synk): arch_p_decoder_choices_seq unused — DECODERS_seq == ['seq'],
    # so only the sequence decoder branch exists.
    del arch_p_decoder_choices_seq

    # DARTS mixture weights (mean over edge softmax collapses the cell graph).
    w_enc_mix = jax.nn.softmax(arch_p_encoder_seq, axis=-1).mean(axis=0)
    w_dec_mix = jax.nn.softmax(arch_p_decoder_seq, axis=-1).mean(axis=0)
    w_hs_mix = jax.nn.softmax(arch_p_heads_seq, axis=-1)
    w_ef_mix = jax.nn.softmax(arch_p_encoder_flat, axis=-1).mean(axis=0)
    w_hf_mix = jax.nn.softmax(arch_p_heads_flat, axis=-1)
    out_w = jax.nn.softmax(arch_p_net[0], axis=-1).astype(jnp.float32)
    w0, w1 = out_w[0], out_w[1]

    # Algebraic pre-mixing (exact: every realized primitive is affine).
    w_enc, b_enc = _premix(w_enc_mix, params["W_enc_seq"], params["b_enc_seq"])
    w_dec, b_dec = _premix(w_dec_mix, params["W_dec_seq"], params["b_dec_seq"])
    w_hs, b_hs = _premix(w_hs_mix, params["W_head_seq"], params["b_head_seq"])

    # Flat branch: pre-mixed + transposed directly, forecast rows only
    # (forecast_only_flat=True), then decomp + flat head + w1 fully folded.
    a_mat = jnp.asarray(_MA_MATRIX)
    w_fl_t_fc = jnp.einsum('p,pkn->nk', w_ef_mix, params["W_flat"],
                           precision=_HIGHEST)[WINDOW:, :]            # (H, W)
    b_fl_fc = jnp.einsum('p,pn->n', w_ef_mix, params["b_flat"],
                         precision=_HIGHEST)[WINDOW:]                 # (H,)
    w_hf_t = jnp.einsum('p,pkn->nk', w_hf_mix, params["W_head_flat"],
                        precision=_HIGHEST)                           # (H, H)
    b_hf = jnp.einsum('p,pn->n', w_hf_mix, params["b_head_flat"],
                      precision=_HIGHEST)                             # (H,)
    w_ft = w1 * jnp.dot(w_hf_t, jnp.dot(w_fl_t_fc, a_mat, precision=_HIGHEST),
                        precision=_HIGHEST)                           # (H, W)
    b_ft = w1 * (jnp.dot(w_hf_t, b_fl_fc, precision=_HIGHEST) + b_hf)  # (H,)
    w_ft_bd = jnp.kron(jnp.eye(B, dtype=jnp.float32), w_ft)           # (B*H, B*W)
    b_ft_bd = jnp.tile(b_ft.reshape(HORIZON, 1), (B, 1))              # (B*H, 1)

    pieces = {
        "xp": x_past.astype(jnp.float32).reshape(B * WINDOW, D_IN_PAST),
        "xf": x_future.astype(jnp.float32).reshape(B * HORIZON, D_IN_FUT),
        "seas_bd": jnp.asarray(_SEAS_BD),
        "sel_last": jnp.asarray(_SEL_BD),
        "w_enc": w_enc, "b_enc": b_enc.reshape(1, D_MODEL),
        "w_ce": params["W_cell_enc"].reshape(N_CELLS_SEQ * D_MODEL, D_MODEL),
        "b_ce": params["b_cell_enc"],
        "w_dec": w_dec, "b_dec": b_dec.reshape(1, D_MODEL),
        "w_cd": params["W_cell_dec"].reshape(N_CELLS_SEQ * D_MODEL, D_MODEL),
        "b_cd": params["b_cell_dec"],
        "w_hs_bc": w_hs, "b_hs_bc": b_hs.reshape(1, D_OUT),
        "w_hs_fc": w0 * w_hs, "b_hs_fc": (w0 * b_hs).reshape(1, D_OUT),
        "w_ft_bd": w_ft_bd, "b_ft": b_ft_bd,
    }
    slab = _pack_slab(pieces)

    vm = pl.BlockSpec(memory_space=pltpu.MemorySpace.VMEM)
    out = pl.pallas_call(
        _fused_forward_kernel,
        out_shape=jax.ShapeDtypeStruct((B * (WINDOW + HORIZON), D_OUT), jnp.float32),
        in_specs=[vm],
        out_specs=vm,
        cost_estimate=pl.CostEstimate(flops=_FLOPS, transcendentals=0,
                                      bytes_accessed=_BYTES),
    )(slab)

    backcast = out[:B * WINDOW].reshape(B, WINDOW, D_OUT)
    forecast = out[B * WINDOW:].reshape(B, HORIZON, D_OUT)
    if FORECAST_ONLY_SEQ:
        return forecast
    return backcast, forecast


# ---------------------------------------------------------------------------
# Pure-JAX reference (original per-primitive formulation) for validation.
# ---------------------------------------------------------------------------
@jax.jit
def _reference_forward(params, x_past, x_future, a_enc_s, a_dec_s, a_h_s,
                       a_enc_f, a_h_f, a_net):
    x = x_past.astype(jnp.float32)
    pad = (DECOMP_KERNEL - 1) // 2
    front = jnp.repeat(x[:, :1, :], pad, axis=1)
    end = jnp.repeat(x[:, -1:, :], pad, axis=1)
    xp = jnp.concatenate([front, x, end], axis=1)
    mean = jnp.stack([xp[:, j:j + WINDOW, :] for j in range(DECOMP_KERNEL)], 0).mean(0)
    seasonal, trend = x - mean, mean

    def mixed(xm, w_stack, b_stack, mw):          # sum_p w_p (x W_p + b_p)
        y = jnp.einsum('mk,pkn->pmn', xm, w_stack) + b_stack[:, None, :]
        return jnp.einsum('p,pmn->mn', mw, y)

    w_enc = jax.nn.softmax(a_enc_s, -1).mean(0)
    w_dec = jax.nn.softmax(a_dec_s, -1).mean(0)
    w_hs = jax.nn.softmax(a_h_s, -1)
    w_ef = jax.nn.softmax(a_enc_f, -1).mean(0)
    w_hf = jax.nn.softmax(a_h_f, -1)
    ow = jax.nn.softmax(a_net[0], -1)

    h = mixed(seasonal.reshape(B * WINDOW, D_IN_PAST),
              params["W_enc_seq"], params["b_enc_seq"], w_enc)
    for c in range(N_CELLS_SEQ):
        h = h + jax.nn.relu(h @ params["W_cell_enc"][c] + params["b_cell_enc"][c])
    enc = h.reshape(B, WINDOW, D_MODEL)

    hf = mixed(x_future.reshape(B * HORIZON, D_IN_FUT),
               params["W_dec_seq"], params["b_dec_seq"], w_dec)
    hf = (hf.reshape(B, HORIZON, D_MODEL) + enc[:, -1:, :]).reshape(B * HORIZON, D_MODEL)
    for c in range(N_CELLS_SEQ):
        hf = hf + jax.nn.relu(hf @ params["W_cell_dec"][c] + params["b_cell_dec"][c])

    fc_seq = mixed(hf, params["W_head_seq"], params["b_head_seq"], w_hs
                   ).reshape(B, HORIZON, D_OUT)
    bc_seq = mixed(enc.reshape(B * WINDOW, D_MODEL),
                   params["W_head_seq"], params["b_head_seq"], w_hs
                   ).reshape(B, WINDOW, D_OUT)

    xt = jnp.transpose(trend[:, :, :D_OUT], (0, 2, 1)).reshape(B * D_OUT, WINDOW)
    fo = mixed(xt, params["W_flat"], params["b_flat"], w_ef)
    fo = fo.reshape(B, D_OUT, WINDOW + HORIZON)[:, :, WINDOW:]
    fc_flat = mixed(fo.reshape(B * D_OUT, HORIZON),
                    params["W_head_flat"], params["b_head_flat"], w_hf
                    ).reshape(B, D_OUT, HORIZON).transpose(0, 2, 1)

    forecast = ow[0] * fc_seq + ow[1] * fc_flat
    return bc_seq, forecast


if __name__ == "__main__":
    key = jax.random.PRNGKey(0)
    k_par, k1, k2, k3, k4, k5, k6, k7, k8 = jax.random.split(key, 9)

    params = init_params(k_par)

    x_past = jax.random.normal(k1, (B, WINDOW, D_IN_PAST), jnp.float32)
    x_future = jax.random.normal(k2, (B, HORIZON, D_IN_FUT), jnp.float32)

    arch_p_encoder_seq = jax.random.normal(k3, (N_EDGES_SEQ, N_PRIM_ENC_SEQ), jnp.float32)
    arch_p_decoder_seq = jax.random.normal(k4, (N_EDGES_SEQ, N_PRIM_DEC_SEQ), jnp.float32)
    arch_p_heads_seq = jax.random.normal(k5, (N_HEADS,), jnp.float32)
    arch_p_encoder_flat = jax.random.normal(k6, (N_EDGES_FLAT, N_PRIM_ENC_FLAT), jnp.float32)
    arch_p_heads_flat = jax.random.normal(k7, (N_HEADS,), jnp.float32)
    arch_p_decoder_choices_seq = jnp.ones((1, 1), jnp.float32)   # single 'seq' decoder
    arch_p_net = jax.random.normal(k8, (1, 2), jnp.float32)

    backcast, forecast = mixed_net_forward(
        params, x_past, x_future,
        arch_p_encoder_seq, arch_p_decoder_seq, arch_p_heads_seq,
        arch_p_encoder_flat, arch_p_heads_flat,
        arch_p_decoder_choices_seq, arch_p_net)
    backcast = jax.block_until_ready(backcast)
    forecast = jax.block_until_ready(forecast)

    assert backcast.shape == (B, WINDOW, D_OUT)
    assert forecast.shape == (B, HORIZON, D_OUT)
    assert jnp.all(jnp.isfinite(backcast)) and jnp.all(jnp.isfinite(forecast))

    # Validate against the per-primitive reference, computed at HIGHEST matmul
    # precision so it is a clean baseline.  The remaining tolerance reflects
    # the MXU's default-precision f32 (bf16-pass) rounding inside the Pallas
    # kernel, not the (exact) algebraic premixing/folding.
    with jax.default_matmul_precision("float32"):
        bc_ref, fc_ref = _reference_forward(
            params, x_past, x_future,
            arch_p_encoder_seq, arch_p_decoder_seq, arch_p_heads_seq,
            arch_p_encoder_flat, arch_p_heads_flat, arch_p_net)
    bc_ref = jax.block_until_ready(bc_ref)
    fc_ref = jax.block_until_ready(fc_ref)
    err = max(float(jnp.max(jnp.abs(backcast - bc_ref))),
              float(jnp.max(jnp.abs(forecast - fc_ref))))
    assert err < 1e-2, f"mismatch vs reference: max abs err = {err}"

    print("KERNEL_OK")
</pallas_src>

<mosaic_0001>
module attributes {stable_mosaic.version = 11 : i64} {
  func.func @_fused_forward_kernel(%arg0: memref<320x32xf32, #tpu.memory_space<vmem>>, %arg1: memref<24x2xf32, #tpu.memory_space<vmem>>) attributes {dimension_semantics = [], scalar_prefetch = 0 : i64, scratch_operands = 0 : i64, tpu.core_type = #tpu.core_type<tc>} {
    %c0 = arith.constant 0 : index
    %c0_0 = arith.constant 0 : index
    %0 = vector.load %arg0[%c0, %c0_0] : memref<320x32xf32, #tpu.memory_space<vmem>>, vector<16x4xf32>
    %c16 = arith.constant 16 : index
    %c0_1 = arith.constant 0 : index
    %1 = vector.load %arg0[%c16, %c0_1] : memref<320x32xf32, #tpu.memory_space<vmem>>, vector<8x3xf32>
    %c24 = arith.constant 24 : index
    %c0_2 = arith.constant 0 : index
    %2 = vector.load %arg0[%c24, %c0_2] : memref<320x32xf32, #tpu.memory_space<vmem>>, vector<16x16xf32>
    %cst = arith.constant dense<0.000000e+00> : vector<16x4xf32>
    %3 = tpu.matmul %2, %0, %cst {dimension_numbers = #tpu.dot_dimension_numbers<[1], [0], [0], [1], [0, 0, 1, 1], [], []>} : vector<16x16xf32>, vector<16x4xf32>, vector<16x4xf32> -> vector<16x4xf32>
    %c48 = arith.constant 48 : index
    %c0_3 = arith.constant 0 : index
    %4 = vector.load %arg0[%c48, %c0_3] : memref<320x32xf32, #tpu.memory_space<vmem>>, vector<4x32xf32>
    %cst_4 = arith.constant dense<0.000000e+00> : vector<16x32xf32>
    %5 = tpu.matmul %3, %4, %cst_4 {dimension_numbers = #tpu.dot_dimension_numbers<[1], [0], [0], [1], [0, 0, 1, 1], [], []>} : vector<16x4xf32>, vector<4x32xf32>, vector<16x32xf32> -> vector<16x32xf32>
    %c56 = arith.constant 56 : index
    %c0_5 = arith.constant 0 : index
    %6 = vector.load %arg0[%c56, %c0_5] : memref<320x32xf32, #tpu.memory_space<vmem>>, vector<1x32xf32>
    %7 = vector.broadcast %6 : vector<1x32xf32> to vector<16x32xf32>
    %8 = arith.addf %5, %7 : vector<16x32xf32>
    %c64 = arith.constant 64 : index
    %c0_6 = arith.constant 0 : index
    %9 = vector.load %arg0[%c64, %c0_6] : memref<320x32xf32, #tpu.memory_space<vmem>>, vector<64x32xf32>
    %c128 = arith.constant 128 : index
    %c0_7 = arith.constant 0 : index
    %10 = vector.load %arg0[%c128, %c0_7] : memref<320x32xf32, #tpu.memory_space<vmem>>, vector<2x32xf32>
    %11 = vector.extract_strided_slice %9 {offsets = [0, 0], sizes = [32, 32], strides = [1, 1]} : vector<64x32xf32> to vector<32x32xf32>
    %cst_8 = arith.constant dense<0.000000e+00> : vector<16x32xf32>
    %12 = tpu.matmul %8, %11, %cst_8 {dimension_numbers = #tpu.dot_dimension_numbers<[1], [0], [0], [1], [0, 0, 1, 1], [], []>} : vector<16x32xf32>, vector<32x32xf32>, vector<16x32xf32> -> vector<16x32xf32>
    %13 = vector.extract_strided_slice %10 {offsets = [0, 0], sizes = [1, 32], strides = [1, 1]} : vector<2x32xf32> to vector<1x32xf32>
    %14 = vector.broadcast %13 : vector<1x32xf32> to vector<16x32xf32>
    %15 = arith.addf %12, %14 : vector<16x32xf32>
    %cst_9 = arith.constant 0.000000e+00 : f32
    %16 = vector.broadcast %cst_9 : f32 to vector<16x32xf32>
    %17 = arith.maximumf %15, %16 : vector<16x32xf32>
    %18 = arith.addf %8, %17 : vector<16x32xf32>
    %19 = vector.extract_strided_slice %9 {offsets = [32, 0], sizes = [32, 32], strides = [1, 1]} : vector<64x32xf32> to vector<32x32xf32>
    %cst_10 = arith.constant dense<0.000000e+00> : vector<16x32xf32>
    %20 = tpu.matmul %18, %19, %cst_10 {dimension_numbers = #tpu.dot_dimension_numbers<[1], [0], [0], [1], [0, 0, 1, 1], [], []>} : vector<16x32xf32>, vector<32x32xf32>, vector<16x32xf32> -> vector<16x32xf32>
    %21 = vector.extract_strided_slice %10 {offsets = [1, 0], sizes = [1, 32], strides = [1, 1]} : vector<2x32xf32> to vector<1x32xf32>
    %22 = vector.broadcast %21 : vector<1x32xf32> to vector<16x32xf32>
    %23 = arith.addf %20, %22 : vector<16x32xf32>
    %cst_11 = arith.constant 0.000000e+00 : f32
    %24 = vector.broadcast %cst_11 : f32 to vector<16x32xf32>
    %25 = arith.maximumf %23, %24 : vector<16x32xf32>
    %26 = arith.addf %18, %25 : vector<16x32xf32>
    %c136 = arith.constant 136 : index
    %c0_12 = arith.constant 0 : index
    %27 = vector.load %arg0[%c136, %c0_12] : memref<320x32xf32, #tpu.memory_space<vmem>>, vector<3x32xf32>
    %cst_13 = arith.constant dense<0.000000e+00> : vector<8x32xf32>
    %28 = tpu.matmul %1, %27, %cst_13 {dimension_numbers = #tpu.dot_dimension_numbers<[1], [0], [0], [1], [0, 0, 1, 1], [], []>} : vector<8x3xf32>, vector<3x32xf32>, vector<8x32xf32> -> vector<8x32xf32>
    %c144 = arith.constant 144 : index
    %c0_14 = arith.constant 0 : index
    %29 = vector.load %arg0[%c144, %c0_14] : memref<320x32xf32, #tpu.memory_space<vmem>>, vector<1x32xf32>
    %30 = vector.broadcast %29 : vector<1x32xf32> to vector<8x32xf32>
    %31 = arith.addf %28, %30 : vector<8x32xf32>
    %c40 = arith.constant 40 : index
    %c0_15 = arith.constant 0 : index
    %32 = vector.load %arg0[%c40, %c0_15] : memref<320x32xf32, #tpu.memory_space<vmem>>, vector<8x16xf32>
    %cst_16 = arith.constant dense<0.000000e+00> : vector<8x32xf32>
    %33 = tpu.matmul %32, %26, %cst_16 {dimension_numbers = #tpu.dot_dimension_numbers<[1], [0], [0], [1], [0, 0, 1, 1], [], []>} : vector<8x16xf32>, vector<16x32xf32>, vector<8x32xf32> -> vector<8x32xf32>
    %34 = arith.addf %31, %33 : vector<8x32xf32>
    %c152 = arith.constant 152 : index
    %c0_17 = arith.constant 0 : index
    %35 = vector.load %arg0[%c152, %c0_17] : memref<320x32xf32, #tpu.memory_space<vmem>>, vector<64x32xf32>
    %c216 = arith.constant 216 : index
    %c0_18 = arith.constant 0 : index
    %36 = vector.load %arg0[%c216, %c0_18] : memref<320x32xf32, #tpu.memory_space<vmem>>, vector<2x32xf32>
    %37 = vector.extract_strided_slice %35 {offsets = [0, 0], sizes = [32, 32], strides = [1, 1]} : vector<64x32xf32> to vector<32x32xf32>
    %cst_19 = arith.constant dense<0.000000e+00> : vector<8x32xf32>
    %38 = tpu.matmul %34, %37, %cst_19 {dimension_numbers = #tpu.dot_dimension_numbers<[1], [0], [0], [1], [0, 0, 1, 1], [], []>} : vector<8x32xf32>, vector<32x32xf32>, vector<8x32xf32> -> vector<8x32xf32>
    %39 = vector.extract_strided_slice %36 {offsets = [0, 0], sizes = [1, 32], strides = [1, 1]} : vector<2x32xf32> to vector<1x32xf32>
    %40 = vector.broadcast %39 : vector<1x32xf32> to vector<8x32xf32>
    %41 = arith.addf %38, %40 : vector<8x32xf32>
    %cst_20 = arith.constant 0.000000e+00 : f32
    %42 = vector.broadcast %cst_20 : f32 to vector<8x32xf32>
    %43 = arith.maximumf %41, %42 : vector<8x32xf32>
    %44 = arith.addf %34, %43 : vector<8x32xf32>
    %45 = vector.extract_strided_slice %35 {offsets = [32, 0], sizes = [32, 32], strides = [1, 1]} : vector<64x32xf32> to vector<32x32xf32>
    %cst_21 = arith.constant dense<0.000000e+00> : vector<8x32xf32>
    %46 = tpu.matmul %44, %45, %cst_21 {dimension_numbers = #tpu.dot_dimension_numbers<[1], [0], [0], [1], [0, 0, 1, 1], [], []>} : vector<8x32xf32>, vector<32x32xf32>, vector<8x32xf32> -> vector<8x32xf32>
    %47 = vector.extract_strided_slice %36 {offsets = [1, 0], sizes = [1, 32], strides = [1, 1]} : vector<2x32xf32> to vector<1x32xf32>
    %48 = vector.broadcast %47 : vector<1x32xf32> to vector<8x32xf32>
    %49 = arith.addf %46, %48 : vector<8x32xf32>
    %cst_22 = arith.constant 0.000000e+00 : f32
    %50 = vector.broadcast %cst_22 : f32 to vector<8x32xf32>
    %51 = arith.maximumf %49, %50 : vector<8x32xf32>
    %52 = arith.addf %44, %51 : vector<8x32xf32>
    %c224 = arith.constant 224 : index
    %c0_23 = arith.constant 0 : index
    %53 = vector.load %arg0[%c224, %c0_23] : memref<320x32xf32, #tpu.memory_space<vmem>>, vector<32x2xf32>
    %cst_24 = arith.constant dense<0.000000e+00> : vector<16x2xf32>
    %54 = tpu.matmul %26, %53, %cst_24 {dimension_numbers = #tpu.dot_dimension_numbers<[1], [0], [0], [1], [0, 0, 1, 1], [], []>} : vector<16x32xf32>, vector<32x2xf32>, vector<16x2xf32> -> vector<16x2xf32>
    %c256 = arith.constant 256 : index
    %c0_25 = arith.constant 0 : index
    %55 = vector.load %arg0[%c256, %c0_25] : memref<320x32xf32, #tpu.memory_space<vmem>>, vector<1x2xf32>
    %56 = vector.broadcast %55 : vector<1x2xf32> to vector<16x2xf32>
    %57 = arith.addf %54, %56 : vector<16x2xf32>
    %c264 = arith.constant 264 : index
    %c0_26 = arith.constant 0 : index
    %58 = vector.load %arg0[%c264, %c0_26] : memref<320x32xf32, #tpu.memory_space<vmem>>, vector<32x2xf32>
    %cst_27 = arith.constant dense<0.000000e+00> : vector<8x2xf32>
    %59 = tpu.matmul %52, %58, %cst_27 {dimension_numbers = #tpu.dot_dimension_numbers<[1], [0], [0], [1], [0, 0, 1, 1], [], []>} : vector<8x32xf32>, vector<32x2xf32>, vector<8x2xf32> -> vector<8x2xf32>
    %c296 = arith.constant 296 : index
    %c0_28 = arith.constant 0 : index
    %60 = vector.load %arg0[%c296, %c0_28] : memref<320x32xf32, #tpu.memory_space<vmem>>, vector<1x2xf32>
    %61 = vector.broadcast %60 : vector<1x2xf32> to vector<8x2xf32>
    %62 = arith.addf %59, %61 : vector<8x2xf32>
    %c304 = arith.constant 304 : index
    %c0_29 = arith.constant 0 : index
    %63 = vector.load %arg0[%c304, %c0_29] : memref<320x32xf32, #tpu.memory_space<vmem>>, vector<8x16xf32>
    %64 = vector.extract_strided_slice %0 {offsets = [0, 0], sizes = [16, 2], strides = [1, 1]} : vector<16x4xf32> to vector<16x2xf32>
    %cst_30 = arith.constant dense<0.000000e+00> : vector<8x2xf32>
    %65 = tpu.matmul %63, %64, %cst_30 {dimension_numbers = #tpu.dot_dimension_numbers<[1], [0], [0], [1], [0, 0, 1, 1], [], []>} : vector<8x16xf32>, vector<16x2xf32>, vector<8x2xf32> -> vector<8x2xf32>
    %66 = arith.addf %62, %65 : vector<8x2xf32>
    %c312 = arith.constant 312 : index
    %c0_31 = arith.constant 0 : index
    %67 = vector.load %arg0[%c312, %c0_31] : memref<320x32xf32, #tpu.memory_space<vmem>>, vector<8x1xf32>
    %68 = vector.broadcast %67 : vector<8x1xf32> to vector<8x2xf32>
    %69 = arith.addf %66, %68 : vector<8x2xf32>
    %70 = tpu.concatenate %57, %69 in 0 : vector<16x2xf32>, vector<8x2xf32> -> vector<24x2xf32>
    %c0_32 = arith.constant 0 : index
    %c0_33 = arith.constant 0 : index
    %71 = vector.load %arg1[%c0_32, %c0_33] : memref<24x2xf32, #tpu.memory_space<vmem>>, vector<24x2xf32>
    tpu.vector_store %arg1[%c0_32, %c0_33], %70 {strides = array<i32>} : memref<24x2xf32, #tpu.memory_space<vmem>>, vector<24x2xf32>,
    return
  }
}

</mosaic_0001>

<llo_original>
// kernel: mixed_net_forward.1
$region0: #{mixed_net_forward.1}
  #allocation0 [shape = 'u32[]', space=smem, size = 0x4, offset = 0x4, fixed_abs, tag = 'smem constant byte address 0x4 - core index']
  #allocation1 [shape = 'u32[144,128]{1,0:T(1,128)}', space=vmem, size = 0x12000, scoped, tag = 'internal scratch']
  %s0 = inlined_call_operand.vmem [shape: f32[320,32], index: 0, kind: input, shape index: {}]
  %s1 = inlined_call_operand.vmem [shape: f32[24,2], index: 1, kind: output, shape index: {}]
  %s2 = sld [smem:[#allocation0]]
  $region14: #{mixed_net_forward.1} parent=0
    _
  %s4 = ssub.s32 1, %s2
  %s5 = scalar_select 0, %s4, %s2
  // Predicated region
  $region2: #{mixed_net_forward.1} parent=0 // pred_check
    _
  $region3: #{mixed_net_forward.1} parent=0 // pred_check_branch
    %7 = sbr.rel (0) target = $region5
  $region4: #{mixed_net_forward.1} parent=0 // pred_region
    _
  $region5: #{mixed_net_forward.1} parent=0 // pred_fallthru
    _
  %v8 = vld [vmem:[%s0] sm:$0xff]
  %v9 = vld [vmem:[%s0 + $0x8] sm:$0xff]
  %v10 = vld [vmem:[%s0 + $0x10] sm:$0xff]
  %v11 = vld [vmem:[%s0 + $0x18] sm:$0xff]
  %v12 = vld [vmem:[%s0 + $0x20] sm:$0xff]
  %vm13 = vcmask 130048
  %v15 = vsel %vm13, %v11, 0
  %v18 = vsel %vm13, %v12, 0
  %20 = vmatprep.subr.mxu0 0.0
  %21 = vmatpush1.msra.mxu0 %v8
  %22 = vmatprep.subr.mxu0 0.0
  %23 = vmatpush1.msra.mxu0 %v9
  %24 = vmatprep.subr.mxu0 0.0
  %25 = vmatpush1.msra.mxu0 0.0
  %26 = vmatprep.subr.mxu0 0.0
  %27 = vmatpush1.msra.mxu0 0.0
  %28 = vmatprep.subr.mxu0 0.0
  %29 = vmatpush1.msra.mxu0 0.0
  %30 = vmatprep.subr.mxu0 0.0
  %31 = vmatpush1.msra.mxu0 0.0
  %32 = vmatprep.subr.mxu0 0.0
  %33 = vmatpush1.msra.mxu0 0.0
  %34 = vmatprep.subr.mxu0 0.0
  %35 = vmatpush1.msra.mxu0 0.0
  %36 = vmatprep.subr.mxu0 0.0
  %37 = vmatpush1.msra.mxu0 0.0
  %38 = vmatprep.subr.mxu0 0.0
  %39 = vmatpush1.msra.mxu0 0.0
  %40 = vmatprep.subr.mxu0 0.0
  %41 = vmatpush1.msra.mxu0 0.0
  %42 = vmatprep.subr.mxu0 0.0
  %43 = vmatpush1.msra.mxu0 0.0
  %44 = vmatprep.subr.mxu0 0.0
  %45 = vmatpush1.msra.mxu0 0.0
  %46 = vmatprep.subr.mxu0 0.0
  %47 = vmatpush1.msra.mxu0 0.0
  %48 = vmatprep.subr.mxu0 0.0
  %49 = vmatpush1.msra.mxu0 0.0
  %50 = vmatprep.subr.mxu0 0.0
  %51 = vmatpush1.msra.mxu0 0.0
  %52 = vmatprep.subr.mxu0 0.0
  %53 = vmatpush1.msra.mxu0 0.0
  %54 = vmatprep.subr.mxu0 0.0
  %55 = vmatpush1.msra.mxu0 0.0
  %56 = vmatprep.subr.mxu0 0.0
  %57 = vmatpush1.msra.mxu0 0.0
  %58 = vmatprep.subr.mxu0 0.0
  %59 = vmatpush1.msra.mxu0 0.0
  %60 = vmatprep.subr.mxu0 0.0
  %61 = vmatpush1.msra.mxu0 0.0
  %62 = vmatprep.subr.mxu0 0.0
  %63 = vmatpush1.msra.mxu0 0.0
  %64 = vmatprep.subr.mxu0 0.0
  %65 = vmatpush1.msra.mxu0 0.0
  %66 = vmatprep.subr.mxu0 0.0
  %67 = vmatpush1.msra.mxu0 0.0
  %68 = vmatprep.subr.mxu0 0.0
  %69 = vmatpush1.msra.mxu0 0.0
  %70 = vmatprep.subr.mxu0 0.0
  %71 = vmatpush1.msra.mxu0 0.0
  %72 = vmatprep.subr.mxu0 0.0
  %73 = vmatpush1.msra.mxu0 0.0
  %74 = vmatprep.subr.mxu0 0.0
  %75 = vmatpush1.msra.mxu0 0.0
  %76 = vmatprep.subr.mxu0 0.0
  %77 = vmatpush1.msra.mxu0 0.0
  %78 = vmatprep.subr.mxu0 0.0
  %79 = vmatpush1.msra.mxu0 0.0
  %80 = vmatprep.subr.mxu0 0.0
  %81 = vmatpush1.msra.mxu0 0.0
  %82 = vmatprep.subr.mxu0 0.0
  %83 = vmatpush1.msra.mxu0 0.0
  %84 = vmatprep.mubr.f32.mxu0 0.0
  %85 = vmatmul.mubr.f32.gmra.mrb[0].mxu0 %v15
  %v86 = vpop.f32.mrb[0].mxu0
  %v87 = vadd.f32 0.0, %v86
  %v88 = vpop.f32.mrb[0].mxu0
  %89 = vmatprep.mubr.f32.mxu0 0.0
  %90 = vmatmul.mubr.f32.gmra.mrb[0].mxu0 %v18
  %v91 = vpop.f32.mrb[0].mxu0
  %v92 = vadd.f32 0.0, %v91
  %v93 = vpop.f32.mrb[0].mxu0
  %94 = vdwg.mxu0
  %v95 = vld [vmem:[%s0 + $0x30] sm:$0xf]
  %v96 = vld [vmem:[%s0 + $0x38] sm:$0x1]
  %v97 = vlaneseq
  %v98 = vshrl.u32 %v97, 7
  %v99 = vsub.s32 0, %v98
  %v100 = vrot.slane %v96, %v99
  %vm101 = vcmask 31744
  %v103 = vsel %vm101, %v87, 0
  %v106 = vsel %vm101, %v92, 0
  %vm108 = vcmask 1043456
  %v110 = vsel %vm108, %v95, 0
  %112 = vmatprep.subr.mxu0 0.0
  %113 = vmatpush1.msra.mxu0 %v110
  %114 = vmatprep.subr.mxu0 0.0
  %115 = vmatpush1.msra.mxu0 0.0
  %116 = vmatprep.subr.mxu0 0.0
  %117 = vmatpush1.msra.mxu0 0.0
  %118 = vmatprep.subr.mxu0 0.0
  %119 = vmatpush1.msra.mxu0 0.0
  %120 = vmatprep.subr.mxu0 0.0
  %121 = vmatpush1.msra.mxu0 0.0
  %122 = vmatprep.subr.mxu0 0.0
  %123 = vmatpush1.msra.mxu0 0.0
  %124 = vmatprep.subr.mxu0 0.0
  %125 = vmatpush1.msra.mxu0 0.0
  %126 = vmatprep.subr.mxu0 0.0
  %127 = vmatpush1.msra.mxu0 0.0
  %128 = vmatprep.subr.mxu0 0.0
  %129 = vmatpush1.msra.mxu0 0.0
  %130 = vmatprep.subr.mxu0 0.0
  %131 = vmatpush1.msra.mxu0 0.0
  %132 = vmatprep.subr.mxu0 0.0
  %133 = vmatpush1.msra.mxu0 0.0
  %134 = vmatprep.subr.mxu0 0.0
  %135 = vmatpush1.msra.mxu0 0.0
  %136 = vmatprep.subr.mxu0 0.0
  %137 = vmatpush1.msra.mxu0 0.0
  %138 = vmatprep.subr.mxu0 0.0
  %139 = vmatpush1.msra.mxu0 0.0
  %140 = vmatprep.subr.mxu0 0.0
  %141 = vmatpush1.msra.mxu0 0.0
  %142 = vmatprep.subr.mxu0 0.0
  %143 = vmatpush1.msra.mxu0 0.0
  %144 = vmatprep.subr.mxu0 0.0
  %145 = vmatpush1.msra.mxu0 0.0
  %146 = vmatprep.subr.mxu0 0.0
  %147 = vmatpush1.msra.mxu0 0.0
  %148 = vmatprep.subr.mxu0 0.0
  %149 = vmatpush1.msra.mxu0 0.0
  %150 = vmatprep.subr.mxu0 0.0
  %151 = vmatpush1.msra.mxu0 0.0
  %152 = vmatprep.subr.mxu0 0.0
  %153 = vmatpush1.msra.mxu0 0.0
  %154 = vmatprep.subr.mxu0 0.0
  %155 = vmatpush1.msra.mxu0 0.0
  %156 = vmatprep.subr.mxu0 0.0
  %157 = vmatpush1.msra.mxu0 0.0
  %158 = vmatprep.subr.mxu0 0.0
  %159 = vmatpush1.msra.mxu0 0.0
  %160 = vmatprep.subr.mxu0 0.0
  %161 = vmatpush1.msra.mxu0 0.0
  %162 = vmatprep.subr.mxu0 0.0
  %163 = vmatpush1.msra.mxu0 0.0
  %164 = vmatprep.subr.mxu0 0.0
  %165 = vmatpush1.msra.mxu0 0.0
  %166 = vmatprep.subr.mxu0 0.0
  %167 = vmatpush1.msra.mxu0 0.0
  %168 = vmatprep.subr.mxu0 0.0
  %169 = vmatpush1.msra.mxu0 0.0
  %170 = vmatprep.subr.mxu0 0.0
  %171 = vmatpush1.msra.mxu0 0.0
  %172 = vmatprep.subr.mxu0 0.0
  %173 = vmatpush1.msra.mxu0 0.0
  %174 = vmatprep.subr.mxu0 0.0
  %175 = vmatpush1.msra.mxu0 0.0
  %176 = vmatprep.mubr.f32.mxu0 0.0
  %177 = vmatmul.mubr.f32.gmra.mrb[0].mxu0 %v103
  %v178 = vpop.f32.mrb[0].mxu0
  %v179 = vadd.f32 %v100, %v178
  %v180 = vpop.f32.mrb[0].mxu0
  %181 = vmatprep.mubr.f32.mxu0 0.0
  %182 = vmatmul.mubr.f32.gmra.mrb[0].mxu0 %v106
  %v183 = vpop.f32.mrb[0].mxu0
  %v184 = vadd.f32 %v100, %v183
  %v185 = vpop.f32.mrb[0].mxu0
  %186 = vdwg.mxu0
  %v187 = vld [vmem:[%s0 + $0x40] sm:$0xff]
  %v188 = vld [vmem:[%s0 + $0x48] sm:$0xff]
  %v189 = vld [vmem:[%s0 + $0x50] sm:$0xff]
  %v190 = vld [vmem:[%s0 + $0x58] sm:$0xff]
  %v191 = vld [vmem:[%s0 + $0x60] sm:$0xff]
  %v192 = vld [vmem:[%s0 + $0x68] sm:$0xff]
  %v193 = vld [vmem:[%s0 + $0x70] sm:$0xff]
  %v194 = vld [vmem:[%s0 + $0x78] sm:$0xff]
  %v195 = vld [vmem:[%s0 + $0x80] sm:$0x3]
  %v196 = vlaneseq
  %v197 = vshrl.u32 %v196, 7
  %v198 = vsub.s32 0, %v197
  %v199 = vrot.slane %v195, %v198
  %vm200 = vcmask 261120
  %v202 = vsel %vm200, %v179, 0
  %v205 = vsel %vm200, %v184, 0
  %207 = vmatprep.subr.mxu0 0.0
  %208 = vmatpush1.msra.mxu0 %v187
  %209 = vmatprep.subr.mxu0 0.0
  %210 = vmatpush1.msra.mxu0 %v188
  %211 = vmatprep.subr.mxu0 0.0
  %212 = vmatpush1.msra.mxu0 %v189
  %213 = vmatprep.subr.mxu0 0.0
  %214 = vmatpush1.msra.mxu0 %v190
  %215 = vmatprep.subr.mxu0 0.0
  %216 = vmatpush1.msra.mxu0 0.0
  %217 = vmatprep.subr.mxu0 0.0
  %218 = vmatpush1.msra.mxu0 0.0
  %219 = vmatprep.subr.mxu0 0.0
  %220 = vmatpush1.msra.mxu0 0.0
  %221 = vmatprep.subr.mxu0 0.0
  %222 = vmatpush1.msra.mxu0 0.0
  %223 = vmatprep.subr.mxu0 0.0
  %224 = vmatpush1.msra.mxu0 0.0
  %225 = vmatprep.subr.mxu0 0.0
  %226 = vmatpush1.msra.mxu0 0.0
  %227 = vmatprep.subr.mxu0 0.0
  %228 = vmatpush1.msra.mxu0 0.0
  %229 = vmatprep.subr.mxu0 0.0
  %230 = vmatpush1.msra.mxu0 0.0
  %231 = vmatprep.subr.mxu0 0.0
  %232 = vmatpush1.msra.mxu0 0.0
  %233 = vmatprep.subr.mxu0 0.0
  %234 = vmatpush1.msra.mxu0 0.0
  %235 = vmatprep.subr.mxu0 0.0
  %236 = vmatpush1.msra.mxu0 0.0
  %237 = vmatprep.subr.mxu0 0.0
  %238 = vmatpush1.msra.mxu0 0.0
  %239 = vmatprep.subr.mxu0 0.0
  %240 = vmatpush1.msra.mxu0 0.0
  %241 = vmatprep.subr.mxu0 0.0
  %242 = vmatpush1.msra.mxu0 0.0
  %243 = vmatprep.subr.mxu0 0.0
  %244 = vmatpush1.msra.mxu0 0.0
  %245 = vmatprep.subr.mxu0 0.0
  %246 = vmatpush1.msra.mxu0 0.0
  %247 = vmatprep.subr.mxu0 0.0
  %248 = vmatpush1.msra.mxu0 0.0
  %249 = vmatprep.subr.mxu0 0.0
  %250 = vmatpush1.msra.mxu0 0.0
  %251 = vmatprep.subr.mxu0 0.0
  %252 = vmatpush1.msra.mxu0 0.0
  %253 = vmatprep.subr.mxu0 0.0
  %254 = vmatpush1.msra.mxu0 0.0
  %255 = vmatprep.subr.mxu0 0.0
  %256 = vmatpush1.msra.mxu0 0.0
  %257 = vmatprep.subr.mxu0 0.0
  %258 = vmatpush1.msra.mxu0 0.0
  %259 = vmatprep.subr.mxu0 0.0
  %260 = vmatpush1.msra.mxu0 0.0
  %261 = vmatprep.subr.mxu0 0.0
  %262 = vmatpush1.msra.mxu0 0.0
  %263 = vmatprep.subr.mxu0 0.0
  %264 = vmatpush1.msra.mxu0 0.0
  %265 = vmatprep.subr.mxu0 0.0
  %266 = vmatpush1.msra.mxu0 0.0
  %267 = vmatprep.subr.mxu0 0.0
  %268 = vmatpush1.msra.mxu0 0.0
  %269 = vmatprep.subr.mxu0 0.0
  %270 = vmatpush1.msra.mxu0 0.0
  %271 = vmatprep.mubr.f32.mxu0 0.0
  %272 = vmatmul.mubr.f32.gmra.mrb[0].mxu0 %v202
  %v273 = vpop.f32.mrb[0].mxu0
  %v274 = vadd.f32 %v199, %v273
  %v275 = vpop.f32.mrb[0].mxu0
  %276 = vmatprep.mubr.f32.mxu0 0.0
  %277 = vmatmul.mubr.f32.gmra.mrb[0].mxu0 %v205
  %v278 = vpop.f32.mrb[0].mxu0
  %v279 = vadd.f32 %v199, %v278
  %v280 = vpop.f32.mrb[0].mxu0
  %281 = vdwg.mxu0
  %v282 = vmax.f32 %v274, 0.0
  %v283 = vmax.f32 %v279, 0.0
  %v284 = vadd.f32 %v179, %v282
  %v285 = vadd.f32 %v184, %v283
  %v286 = vlaneseq
  %v287 = vshrl.u32 %v286, 7
  %v288 = vsub.s32 1, %v287
  %v289 = vrot.slane %v195, %v288
  %v291 = vsel %vm200, %v284, 0
  %v294 = vsel %vm200, %v285, 0
  %296 = vmatprep.subr.mxu0 0.0
  %297 = vmatpush1.msra.mxu0 %v191
  %298 = vmatprep.subr.mxu0 0.0
  %299 = vmatpush1.msra.mxu0 %v192
  %300 = vmatprep.subr.mxu0 0.0
  %301 = vmatpush1.msra.mxu0 %v193
  %302 = vmatprep.subr.mxu0 0.0
  %303 = vmatpush1.msra.mxu0 %v194
  %304 = vmatprep.subr.mxu0 0.0
  %305 = vmatpush1.msra.mxu0 0.0
  %306 = vmatprep.subr.mxu0 0.0
  %307 = vmatpush1.msra.mxu0 0.0
  %308 = vmatprep.subr.mxu0 0.0
  %309 = vmatpush1.msra.mxu0 0.0
  %310 = vmatprep.subr.mxu0 0.0
  %311 = vmatpush1.msra.mxu0 0.0
  %312 = vmatprep.subr.mxu0 0.0
  %313 = vmatpush1.msra.mxu0 0.0
  %314 = vmatprep.subr.mxu0 0.0
  %315 = vmatpush1.msra.mxu0 0.0
  %316 = vmatprep.subr.mxu0 0.0
  %317 = vmatpush1.msra.mxu0 0.0
  %318 = vmatprep.subr.mxu0 0.0
  %319 = vmatpush1.msra.mxu0 0.0
  %320 = vmatprep.subr.mxu0 0.0
  %321 = vmatpush1.msra.mxu0 0.0
  %322 = vmatprep.subr.mxu0 0.0
  %323 = vmatpush1.msra.mxu0 0.0
  %324 = vmatprep.subr.mxu0 0.0
  %325 = vmatpush1.msra.mxu0 0.0
  %326 = vmatprep.subr.mxu0 0.0
  %327 = vmatpush1.msra.mxu0 0.0
  %328 = vmatprep.subr.mxu0 0.0
  %329 = vmatpush1.msra.mxu0 0.0
  %330 = vmatprep.subr.mxu0 0.0
  %331 = vmatpush1.msra.mxu0 0.0
  %332 = vmatprep.subr.mxu0 0.0
  %333 = vmatpush1.msra.mxu0 0.0
  %334 = vmatprep.subr.mxu0 0.0
  %335 = vmatpush1.msra.mxu0 0.0
  %336 = vmatprep.subr.mxu0 0.0
  %337 = vmatpush1.msra.mxu0 0.0
  %338 = vmatprep.subr.mxu0 0.0
  %339 = vmatpush1.msra.mxu0 0.0
  %340 = vmatprep.subr.mxu0 0.0
  %341 = vmatpush1.msra.mxu0 0.0
  %342 = vmatprep.subr.mxu0 0.0
  %343 = vmatpush1.msra.mxu0 0.0
  %344 = vmatprep.subr.mxu0 0.0
  %345 = vmatpush1.msra.mxu0 0.0
  %346 = vmatprep.subr.mxu0 0.0
  %347 = vmatpush1.msra.mxu0 0.0
  %348 = vmatprep.subr.mxu0 0.0
  %349 = vmatpush1.msra.mxu0 0.0
  %350 = vmatprep.subr.mxu0 0.0
  %351 = vmatpush1.msra.mxu0 0.0
  %352 = vmatprep.subr.mxu0 0.0
  %353 = vmatpush1.msra.mxu0 0.0
  %354 = vmatprep.subr.mxu0 0.0
  %355 = vmatpush1.msra.mxu0 0.0
  %356 = vmatprep.subr.mxu0 0.0
  %357 = vmatpush1.msra.mxu0 0.0
  %358 = vmatprep.subr.mxu0 0.0
  %359 = vmatpush1.msra.mxu0 0.0
  %360 = vmatprep.mubr.f32.mxu0 0.0
  %361 = vmatmul.mubr.f32.gmra.mrb[0].mxu0 %v291
  %v362 = vpop.f32.mrb[0].mxu0
  %v363 = vadd.f32 %v289, %v362
  %v364 = vpop.f32.mrb[0].mxu0
  %365 = vmatprep.mubr.f32.mxu0 0.0
  %366 = vmatmul.mubr.f32.gmra.mrb[0].mxu0 %v294
  %v367 = vpop.f32.mrb[0].mxu0
  %v368 = vadd.f32 %v289, %v367
  %v369 = vpop.f32.mrb[0].mxu0
  %370 = vdwg.mxu0
  %v371 = vmax.f32 %v363, 0.0
  %v372 = vmax.f32 %v368, 0.0
  %v373 = vadd.f32 %v284, %v371
  %v374 = vadd.f32 %v285, %v372
  %v375 = vld [vmem:[%s0 + $0x88] sm:$0x7]
  %v376 = vld [vmem:[%s0 + $0x90] sm:$0x1]
  %v377 = vlaneseq
  %v378 = vshrl.u32 %v377, 7
  %v379 = vsub.s32 0, %v378
  %v380 = vrot.slane %v376, %v379
  %vm381 = vcmask 23552
  %v383 = vsel %vm381, %v10, 0
  %vm385 = vcmask 1042432
  %v387 = vsel %vm385, %v375, 0
  %389 = vmatprep.subr.mxu0 0.0
  %390 = vmatpush1.msra.mxu0 %v387
  %391 = vmatprep.subr.mxu0 0.0
  %392 = vmatpush1.msra.mxu0 0.0
  %393 = vmatprep.subr.mxu0 0.0
  %394 = vmatpush1.msra.mxu0 0.0
  %395 = vmatprep.subr.mxu0 0.0
  %396 = vmatpush1.msra.mxu0 0.0
  %397 = vmatprep.subr.mxu0 0.0
  %398 = vmatpush1.msra.mxu0 0.0
  %399 = vmatprep.subr.mxu0 0.0
  %400 = vmatpush1.msra.mxu0 0.0
  %401 = vmatprep.subr.mxu0 0.0
  %402 = vmatpush1.msra.mxu0 0.0
  %403 = vmatprep.subr.mxu0 0.0
  %404 = vmatpush1.msra.mxu0 0.0
  %405 = vmatprep.subr.mxu0 0.0
  %406 = vmatpush1.msra.mxu0 0.0
  %407 = vmatprep.subr.mxu0 0.0
  %408 = vmatpush1.msra.mxu0 0.0
  %409 = vmatprep.subr.mxu0 0.0
  %410 = vmatpush1.msra.mxu0 0.0
  %411 = vmatprep.subr.mxu0 0.0
  %412 = vmatpush1.msra.mxu0 0.0
  %413 = vmatprep.subr.mxu0 0.0
  %414 = vmatpush1.msra.mxu0 0.0
  %415 = vmatprep.subr.mxu0 0.0
  %416 = vmatpush1.msra.mxu0 0.0
  %417 = vmatprep.subr.mxu0 0.0
  %418 = vmatpush1.msra.mxu0 0.0
  %419 = vmatprep.subr.mxu0 0.0
  %420 = vmatpush1.msra.mxu0 0.0
  %421 = vmatprep.subr.mxu0 0.0
  %422 = vmatpush1.msra.mxu0 0.0
  %423 = vmatprep.subr.mxu0 0.0
  %424 = vmatpush1.msra.mxu0 0.0
  %425 = vmatprep.subr.mxu0 0.0
  %426 = vmatpush1.msra.mxu0 0.0
  %427 = vmatprep.subr.mxu0 0.0
  %428 = vmatpush1.msra.mxu0 0.0
  %429 = vmatprep.subr.mxu0 0.0
  %430 = vmatpush1.msra.mxu0 0.0
  %431 = vmatprep.subr.mxu0 0.0
  %432 = vmatpush1.msra.mxu0 0.0
  %433 = vmatprep.subr.mxu0 0.0
  %434 = vmatpush1.msra.mxu0 0.0
  %435 = vmatprep.subr.mxu0 0.0
  %436 = vmatpush1.msra.mxu0 0.0
  %437 = vmatprep.subr.mxu0 0.0
  %438 = vmatpush1.msra.mxu0 0.0
  %439 = vmatprep.subr.mxu0 0.0
  %440 = vmatpush1.msra.mxu0 0.0
  %441 = vmatprep.subr.mxu0 0.0
  %442 = vmatpush1.msra.mxu0 0.0
  %443 = vmatprep.subr.mxu0 0.0
  %444 = vmatpush1.msra.mxu0 0.0
  %445 = vmatprep.subr.mxu0 0.0
  %446 = vmatpush1.msra.mxu0 0.0
  %447 = vmatprep.subr.mxu0 0.0
  %448 = vmatpush1.msra.mxu0 0.0
  %449 = vmatprep.subr.mxu0 0.0
  %450 = vmatpush1.msra.mxu0 0.0
  %451 = vmatprep.subr.mxu0 0.0
  %452 = vmatpush1.msra.mxu0 0.0
  %453 = vmatprep.mubr.f32.mxu0 0.0
  %454 = vmatmul.mubr.f32.gmra.mrb[0].mxu0 %v383
  %v455 = vpop.f32.mrb[0].mxu0
  %v456 = vadd.f32 %v380, %v455
  %v457 = vpop.f32.mrb[0].mxu0
  %458 = vdwg.mxu0
  %v459 = vld [vmem:[%s0 + $0x28] sm:$0xff]
  %v461 = vsel %vm13, %v459, 0
  %463 = vmatprep.subr.mxu0 0.0
  %464 = vmatpush1.msra.mxu0 %v373
  %465 = vmatprep.subr.mxu0 0.0
  %466 = vmatpush1.msra.mxu0 %v374
  %467 = vmatprep.subr.mxu0 0.0
  %468 = vmatpush1.msra.mxu0 0.0
  %469 = vmatprep.subr.mxu0 0.0
  %470 = vmatpush1.msra.mxu0 0.0
  %471 = vmatprep.subr.mxu0 0.0
  %472 = vmatpush1.msra.mxu0 0.0
  %473 = vmatprep.subr.mxu0 0.0
  %474 = vmatpush1.msra.mxu0 0.0
  %475 = vmatprep.subr.mxu0 0.0
  %476 = vmatpush1.msra.mxu0 0.0
  %477 = vmatprep.subr.mxu0 0.0
  %478 = vmatpush1.msra.mxu0 0.0
  %479 = vmatprep.subr.mxu0 0.0
  %480 = vmatpush1.msra.mxu0 0.0
  %481 = vmatprep.subr.mxu0 0.0
  %482 = vmatpush1.msra.mxu0 0.0
  %483 = vmatprep.subr.mxu0 0.0
  %484 = vmatpush1.msra.mxu0 0.0
  %485 = vmatprep.subr.mxu0 0.0
  %486 = vmatpush1.msra.mxu0 0.0
  %487 = vmatprep.subr.mxu0 0.0
  %488 = vmatpush1.msra.mxu0 0.0
  %489 = vmatprep.subr.mxu0 0.0
  %490 = vmatpush1.msra.mxu0 0.0
  %491 = vmatprep.subr.mxu0 0.0
  %492 = vmatpush1.msra.mxu0 0.0
  %493 = vmatprep.subr.mxu0 0.0
  %494 = vmatpush1.msra.mxu0 0.0
  %495 = vmatprep.subr.mxu0 0.0
  %496 = vmatpush1.msra.mxu0 0.0
  %497 = vmatprep.subr.mxu0 0.0
  %498 = vmatpush1.msra.mxu0 0.0
  %499 = vmatprep.subr.mxu0 0.0
  %500 = vmatpush1.msra.mxu0 0.0
  %501 = vmatprep.subr.mxu0 0.0
  %502 = vmatpush1.msra.mxu0 0.0
  %503 = vmatprep.subr.mxu0 0.0
  %504 = vmatpush1.msra.mxu0 0.0
  %505 = vmatprep.subr.mxu0 0.0
  %506 = vmatpush1.msra.mxu0 0.0
  %507 = vmatprep.subr.mxu0 0.0
  %508 = vmatpush1.msra.mxu0 0.0
  %509 = vmatprep.subr.mxu0 0.0
  %510 = vmatpush1.msra.mxu0 0.0
  %511 = vmatprep.subr.mxu0 0.0
  %512 = vmatpush1.msra.mxu0 0.0
  %513 = vmatprep.subr.mxu0 0.0
  %514 = vmatpush1.msra.mxu0 0.0
  %515 = vmatprep.subr.mxu0 0.0
  %516 = vmatpush1.msra.mxu0 0.0
  %517 = vmatprep.subr.mxu0 0.0
  %518 = vmatpush1.msra.mxu0 0.0
  %519 = vmatprep.subr.mxu0 0.0
  %520 = vmatpush1.msra.mxu0 0.0
  %521 = vmatprep.subr.mxu0 0.0
  %522 = vmatpush1.msra.mxu0 0.0
  %523 = vmatprep.subr.mxu0 0.0
  %524 = vmatpush1.msra.mxu0 0.0
  %525 = vmatprep.subr.mxu0 0.0
  %526 = vmatpush1.msra.mxu0 0.0
  %527 = vmatprep.mubr.f32.mxu0 0.0
  %528 = vmatmul.mubr.f32.gmra.mrb[0].mxu0 %v461
  %v529 = vpop.f32.mrb[0].mxu0
  %v530 = vadd.f32 0.0, %v529
  %v531 = vpop.f32.mrb[0].mxu0
  %532 = vdwg.mxu0
  %v533 = vadd.f32 %v456, %v530
  %v534 = vld [vmem:[%s0 + $0x98] sm:$0xff]
  %v535 = vld [vmem:[%s0 + $0xa0] sm:$0xff]
  %v536 = vld [vmem:[%s0 + $0xa8] sm:$0xff]
  %v537 = vld [vmem:[%s0 + $0xb0] sm:$0xff]
  %v538 = vld [vmem:[%s0 + $0xb8] sm:$0xff]
  %v539 = vld [vmem:[%s0 + $0xc0] sm:$0xff]
  %v540 = vld [vmem:[%s0 + $0xc8] sm:$0xff]
  %v541 = vld [vmem:[%s0 + $0xd0] sm:$0xff]
  %v542 = vld [vmem:[%s0 + $0xd8] sm:$0x3]
  %v543 = vlaneseq
  %v544 = vshrl.u32 %v543, 7
  %v545 = vsub.s32 0, %v544
  %v546 = vrot.slane %v542, %v545
  %v548 = vsel %vm200, %v533, 0
  %550 = vmatprep.subr.mxu0 0.0
  %551 = vmatpush1.msra.mxu0 %v534
  %552 = vmatprep.subr.mxu0 0.0
  %553 = vmatpush1.msra.mxu0 %v535
  %554 = vmatprep.subr.mxu0 0.0
  %555 = vmatpush1.msra.mxu0 %v536
  %556 = vmatprep.subr.mxu0 0.0
  %557 = vmatpush1.msra.mxu0 %v537
  %558 = vmatprep.subr.mxu0 0.0
  %559 = vmatpush1.msra.mxu0 0.0
  %560 = vmatprep.subr.mxu0 0.0
  %561 = vmatpush1.msra.mxu0 0.0
  %562 = vmatprep.subr.mxu0 0.0
  %563 = vmatpush1.msra.mxu0 0.0
  %564 = vmatprep.subr.mxu0 0.0
  %565 = vmatpush1.msra.mxu0 0.0
  %566 = vmatprep.subr.mxu0 0.0
  %567 = vmatpush1.msra.mxu0 0.0
  %568 = vmatprep.subr.mxu0 0.0
  %569 = vmatpush1.msra.mxu0 0.0
  %570 = vmatprep.subr.mxu0 0.0
  %571 = vmatpush1.msra.mxu0 0.0
  %572 = vmatprep.subr.mxu0 0.0
  %573 = vmatpush1.msra.mxu0 0.0
  %574 = vmatprep.subr.mxu0 0.0
  %575 = vmatpush1.msra.mxu0 0.0
  %576 = vmatprep.subr.mxu0 0.0
  %577 = vmatpush1.msra.mxu0 0.0
  %578 = vmatprep.subr.mxu0 0.0
  %579 = vmatpush1.msra.mxu0 0.0
  %580 = vmatprep.subr.mxu0 0.0
  %581 = vmatpush1.msra.mxu0 0.0
  %582 = vmatprep.subr.mxu0 0.0
  %583 = vmatpush1.msra.mxu0 0.0
  %584 = vmatprep.subr.mxu0 0.0
  %585 = vmatpush1.msra.mxu0 0.0
  %586 = vmatprep.subr.mxu0 0.0
  %587 = vmatpush1.msra.mxu0 0.0
  %588 = vmatprep.subr.mxu0 0.0
  %589 = vmatpush1.msra.mxu0 0.0
  %590 = vmatprep.subr.mxu0 0.0
  %591 = vmatpush1.msra.mxu0 0.0
  %592 = vmatprep.subr.mxu0 0.0
  %593 = vmatpush1.msra.mxu0 0.0
  %594 = vmatprep.subr.mxu0 0.0
  %595 = vmatpush1.msra.mxu0 0.0
  %596 = vmatprep.subr.mxu0 0.0
  %597 = vmatpush1.msra.mxu0 0.0
  %598 = vmatprep.subr.mxu0 0.0
  %599 = vmatpush1.msra.mxu0 0.0
  %600 = vmatprep.subr.mxu0 0.0
  %601 = vmatpush1.msra.mxu0 0.0
  %602 = vmatprep.subr.mxu0 0.0
  %603 = vmatpush1.msra.mxu0 0.0
  %604 = vmatprep.subr.mxu0 0.0
  %605 = vmatpush1.msra.mxu0 0.0
  %606 = vmatprep.subr.mxu0 0.0
  %607 = vmatpush1.msra.mxu0 0.0
  %608 = vmatprep.subr.mxu0 0.0
  %609 = vmatpush1.msra.mxu0 0.0
  %610 = vmatprep.subr.mxu0 0.0
  %611 = vmatpush1.msra.mxu0 0.0
  %612 = vmatprep.subr.mxu0 0.0
  %613 = vmatpush1.msra.mxu0 0.0
  %614 = vmatprep.mubr.f32.mxu0 0.0
  %615 = vmatmul.mubr.f32.gmra.mrb[0].mxu0 %v548
  %v616 = vpop.f32.mrb[0].mxu0
  %v617 = vadd.f32 %v546, %v616
  %v618 = vpop.f32.mrb[0].mxu0
  %619 = vdwg.mxu0
  %v620 = vmax.f32 %v617, 0.0
  %v621 = vadd.f32 %v533, %v620
  %v622 = vlaneseq
  %v623 = vshrl.u32 %v622, 7
  %v624 = vsub.s32 1, %v623
  %v625 = vrot.slane %v542, %v624
  %v627 = vsel %vm200, %v621, 0
  %629 = vmatprep.subr.mxu0 0.0
  %630 = vmatpush1.msra.mxu0 %v538
  %631 = vmatprep.subr.mxu0 0.0
  %632 = vmatpush1.msra.mxu0 %v539
  %633 = vmatprep.subr.mxu0 0.0
  %634 = vmatpush1.msra.mxu0 %v540
  %635 = vmatprep.subr.mxu0 0.0
  %636 = vmatpush1.msra.mxu0 %v541
  %637 = vmatprep.subr.mxu0 0.0
  %638 = vmatpush1.msra.mxu0 0.0
  %639 = vmatprep.subr.mxu0 0.0
  %640 = vmatpush1.msra.mxu0 0.0
  %641 = vmatprep.subr.mxu0 0.0
  %642 = vmatpush1.msra.mxu0 0.0
  %643 = vmatprep.subr.mxu0 0.0
  %644 = vmatpush1.msra.mxu0 0.0
  %645 = vmatprep.subr.mxu0 0.0
  %646 = vmatpush1.msra.mxu0 0.0
  %647 = vmatprep.subr.mxu0 0.0
  %648 = vmatpush1.msra.mxu0 0.0
  %649 = vmatprep.subr.mxu0 0.0
  %650 = vmatpush1.msra.mxu0 0.0
  %651 = vmatprep.subr.mxu0 0.0
  %652 = vmatpush1.msra.mxu0 0.0
  %653 = vmatprep.subr.mxu0 0.0
  %654 = vmatpush1.msra.mxu0 0.0
  %655 = vmatprep.subr.mxu0 0.0
  %656 = vmatpush1.msra.mxu0 0.0
  %657 = vmatprep.subr.mxu0 0.0
  %658 = vmatpush1.msra.mxu0 0.0
  %659 = vmatprep.subr.mxu0 0.0
  %660 = vmatpush1.msra.mxu0 0.0
  %661 = vmatprep.subr.mxu0 0.0
  %662 = vmatpush1.msra.mxu0 0.0
  %663 = vmatprep.subr.mxu0 0.0
  %664 = vmatpush1.msra.mxu0 0.0
  %665 = vmatprep.subr.mxu0 0.0
  %666 = vmatpush1.msra.mxu0 0.0
  %667 = vmatprep.subr.mxu0 0.0
  %668 = vmatpush1.msra.mxu0 0.0
  %669 = vmatprep.subr.mxu0 0.0
  %670 = vmatpush1.msra.mxu0 0.0
  %671 = vmatprep.subr.mxu0 0.0
  %672 = vmatpush1.msra.mxu0 0.0
  %673 = vmatprep.subr.mxu0 0.0
  %674 = vmatpush1.msra.mxu0 0.0
  %675 = vmatprep.subr.mxu0 0.0
  %676 = vmatpush1.msra.mxu0 0.0
  %677 = vmatprep.subr.mxu0 0.0
  %678 = vmatpush1.msra.mxu0 0.0
  %679 = vmatprep.subr.mxu0 0.0
  %680 = vmatpush1.msra.mxu0 0.0
  %681 = vmatprep.subr.mxu0 0.0
  %682 = vmatpush1.msra.mxu0 0.0
  %683 = vmatprep.subr.mxu0 0.0
  %684 = vmatpush1.msra.mxu0 0.0
  %685 = vmatprep.subr.mxu0 0.0
  %686 = vmatpush1.msra.mxu0 0.0
  %687 = vmatprep.subr.mxu0 0.0
  %688 = vmatpush1.msra.mxu0 0.0
  %689 = vmatprep.subr.mxu0 0.0
  %690 = vmatpush1.msra.mxu0 0.0
  %691 = vmatprep.subr.mxu0 0.0
  %692 = vmatpush1.msra.mxu0 0.0
  %693 = vmatprep.mubr.f32.mxu0 0.0
  %694 = vmatmul.mubr.f32.gmra.mrb[0].mxu0 %v627
  %v695 = vpop.f32.mrb[0].mxu0
  %v696 = vadd.f32 %v625, %v695
  %v697 = vpop.f32.mrb[0].mxu0
  %698 = vdwg.mxu0
  %v699 = vmax.f32 %v696, 0.0
  %v700 = vadd.f32 %v621, %v699
  %v701 = vld [vmem:[%s0 + $0xe0] sm:$0xff]
  %v702 = vld [vmem:[%s0 + $0xe8] sm:$0xff]
  %v703 = vld [vmem:[%s0 + $0xf0] sm:$0xff]
  %v704 = vld [vmem:[%s0 + $0xf8] sm:$0xff]
  %v705 = vld [vmem:[%s0 + $0x100] sm:$0x1]
  %v706 = vlaneseq
  %v707 = vshrl.u32 %v706, 7
  %v708 = vsub.s32 0, %v707
  %v709 = vrot.slane %v705, %v708
  %v711 = vsel %vm200, %v373, 0
  %v714 = vsel %vm200, %v374, 0
  %716 = vmatprep.subr.mxu0 0.0
  %717 = vmatpush1.msra.mxu0 %v701
  %718 = vmatprep.subr.mxu0 0.0
  %719 = vmatpush1.msra.mxu0 %v702
  %720 = vmatprep.subr.mxu0 0.0
  %721 = vmatpush1.msra.mxu0 %v703
  %722 = vmatprep.subr.mxu0 0.0
  %723 = vmatpush1.msra.mxu0 %v704
  %724 = vmatprep.subr.mxu0 0.0
  %725 = vmatpush1.msra.mxu0 0.0
  %726 = vmatprep.subr.mxu0 0.0
  %727 = vmatpush1.msra.mxu0 0.0
  %728 = vmatprep.subr.mxu0 0.0
  %729 = vmatpush1.msra.mxu0 0.0
  %730 = vmatprep.subr.mxu0 0.0
  %731 = vmatpush1.msra.mxu0 0.0
  %732 = vmatprep.subr.mxu0 0.0
  %733 = vmatpush1.msra.mxu0 0.0
  %734 = vmatprep.subr.mxu0 0.0
  %735 = vmatpush1.msra.mxu0 0.0
  %736 = vmatprep.subr.mxu0 0.0
  %737 = vmatpush1.msra.mxu0 0.0
  %738 = vmatprep.subr.mxu0 0.0
  %739 = vmatpush1.msra.mxu0 0.0
  %740 = vmatprep.subr.mxu0 0.0
  %741 = vmatpush1.msra.mxu0 0.0
  %742 = vmatprep.subr.mxu0 0.0
  %743 = vmatpush1.msra.mxu0 0.0
  %744 = vmatprep.subr.mxu0 0.0
  %745 = vmatpush1.msra.mxu0 0.0
  %746 = vmatprep.subr.mxu0 0.0
  %747 = vmatpush1.msra.mxu0 0.0
  %748 = vmatprep.subr.mxu0 0.0
  %749 = vmatpush1.msra.mxu0 0.0
  %750 = vmatprep.subr.mxu0 0.0
  %751 = vmatpush1.msra.mxu0 0.0
  %752 = vmatprep.subr.mxu0 0.0
  %753 = vmatpush1.msra.mxu0 0.0
  %754 = vmatprep.subr.mxu0 0.0
  %755 = vmatpush1.msra.mxu0 0.0
  %756 = vmatprep.subr.mxu0 0.0
  %757 = vmatpush1.msra.mxu0 0.0
  %758 = vmatprep.subr.mxu0 0.0
  %759 = vmatpush1.msra.mxu0 0.0
  %760 = vmatprep.subr.mxu0 0.0
  %761 = vmatpush1.msra.mxu0 0.0
  %762 = vmatprep.subr.mxu0 0.0
  %763 = vmatpush1.msra.mxu0 0.0
  %764 = vmatprep.subr.mxu0 0.0
  %765 = vmatpush1.msra.mxu0 0.0
  %766 = vmatprep.subr.mxu0 0.0
  %767 = vmatpush1.msra.mxu0 0.0
  %768 = vmatprep.subr.mxu0 0.0
  %769 = vmatpush1.msra.mxu0 0.0
  %770 = vmatprep.subr.mxu0 0.0
  %771 = vmatpush1.msra.mxu0 0.0
  %772 = vmatprep.subr.mxu0 0.0
  %773 = vmatpush1.msra.mxu0 0.0
  %774 = vmatprep.subr.mxu0 0.0
  %775 = vmatpush1.msra.mxu0 0.0
  %776 = vmatprep.subr.mxu0 0.0
  %777 = vmatpush1.msra.mxu0 0.0
  %778 = vmatprep.subr.mxu0 0.0
  %779 = vmatpush1.msra.mxu0 0.0
  %780 = vmatprep.mubr.f32.mxu0 0.0
  %781 = vmatmul.mubr.f32.gmra.mrb[0].mxu0 %v711
  %v782 = vpop.f32.mrb[0].mxu0
  %v783 = vadd.f32 %v709, %v782
  %v784 = vpop.f32.mrb[0].mxu0
  %785 = vmatprep.mubr.f32.mxu0 0.0
  %786 = vmatmul.mubr.f32.gmra.mrb[0].mxu0 %v714
  %v787 = vpop.f32.mrb[0].mxu0
  %v788 = vadd.f32 %v709, %v787
  %v789 = vpop.f32.mrb[0].mxu0
  %790 = vdwg.mxu0
  %v791 = vld [vmem:[%s0 + $0x108] sm:$0xff]
  %v792 = vld [vmem:[%s0 + $0x110] sm:$0xff]
  %v793 = vld [vmem:[%s0 + $0x118] sm:$0xff]
  %v794 = vld [vmem:[%s0 + $0x120] sm:$0xff]
  %v795 = vld [vmem:[%s0 + $0x128] sm:$0x1]
  %v796 = vlaneseq
  %v797 = vshrl.u32 %v796, 7
  %v798 = vsub.s32 0, %v797
  %v799 = vrot.slane %v795, %v798
  %v801 = vsel %vm200, %v700, 0
  %803 = vmatprep.subr.mxu0 0.0
  %804 = vmatpush1.msra.mxu0 %v791
  %805 = vmatprep.subr.mxu0 0.0
  %806 = vmatpush1.msra.mxu0 %v792
  %807 = vmatprep.subr.mxu0 0.0
  %808 = vmatpush1.msra.mxu0 %v793
  %809 = vmatprep.subr.mxu0 0.0
  %810 = vmatpush1.msra.mxu0 %v794
  %811 = vmatprep.subr.mxu0 0.0
  %812 = vmatpush1.msra.mxu0 0.0
  %813 = vmatprep.subr.mxu0 0.0
  %814 = vmatpush1.msra.mxu0 0.0
  %815 = vmatprep.subr.mxu0 0.0
  %816 = vmatpush1.msra.mxu0 0.0
  %817 = vmatprep.subr.mxu0 0.0
  %818 = vmatpush1.msra.mxu0 0.0
  %819 = vmatprep.subr.mxu0 0.0
  %820 = vmatpush1.msra.mxu0 0.0
  %821 = vmatprep.subr.mxu0 0.0
  %822 = vmatpush1.msra.mxu0 0.0
  %823 = vmatprep.subr.mxu0 0.0
  %824 = vmatpush1.msra.mxu0 0.0
  %825 = vmatprep.subr.mxu0 0.0
  %826 = vmatpush1.msra.mxu0 0.0
  %827 = vmatprep.subr.mxu0 0.0
  %828 = vmatpush1.msra.mxu0 0.0
  %829 = vmatprep.subr.mxu0 0.0
  %830 = vmatpush1.msra.mxu0 0.0
  %831 = vmatprep.subr.mxu0 0.0
  %832 = vmatpush1.msra.mxu0 0.0
  %833 = vmatprep.subr.mxu0 0.0
  %834 = vmatpush1.msra.mxu0 0.0
  %835 = vmatprep.subr.mxu0 0.0
  %836 = vmatpush1.msra.mxu0 0.0
  %837 = vmatprep.subr.mxu0 0.0
  %838 = vmatpush1.msra.mxu0 0.0
  %839 = vmatprep.subr.mxu0 0.0
  %840 = vmatpush1.msra.mxu0 0.0
  %841 = vmatprep.subr.mxu0 0.0
  %842 = vmatpush1.msra.mxu0 0.0
  %843 = vmatprep.subr.mxu0 0.0
  %844 = vmatpush1.msra.mxu0 0.0
  %845 = vmatprep.subr.mxu0 0.0
  %846 = vmatpush1.msra.mxu0 0.0
  %847 = vmatprep.subr.mxu0 0.0
  %848 = vmatpush1.msra.mxu0 0.0
  %849 = vmatprep.subr.mxu0 0.0
  %850 = vmatpush1.msra.mxu0 0.0
  %851 = vmatprep.subr.mxu0 0.0
  %852 = vmatpush1.msra.mxu0 0.0
  %853 = vmatprep.subr.mxu0 0.0
  %854 = vmatpush1.msra.mxu0 0.0
  %855 = vmatprep.subr.mxu0 0.0
  %856 = vmatpush1.msra.mxu0 0.0
  %857 = vmatprep.subr.mxu0 0.0
  %858 = vmatpush1.msra.mxu0 0.0
  %859 = vmatprep.subr.mxu0 0.0
  %860 = vmatpush1.msra.mxu0 0.0
  %861 = vmatprep.subr.mxu0 0.0
  %862 = vmatpush1.msra.mxu0 0.0
  %863 = vmatprep.subr.mxu0 0.0
  %864 = vmatpush1.msra.mxu0 0.0
  %865 = vmatprep.subr.mxu0 0.0
  %866 = vmatpush1.msra.mxu0 0.0
  %867 = vmatprep.mubr.f32.mxu0 0.0
  %868 = vmatmul.mubr.f32.gmra.mrb[0].mxu0 %v801
  %v869 = vpop.f32.mrb[0].mxu0
  %v870 = vadd.f32 %v799, %v869
  %v871 = vpop.f32.mrb[0].mxu0
  %872 = vdwg.mxu0
  %v873 = vld [vmem:[%s0 + $0x130] sm:$0xff]
  %v875 = vsel %vm13, %v873, 0
  %877 = vmatprep.subr.mxu0 0.0
  %878 = vmatpush1.msra.mxu0 %v8
  %879 = vmatprep.subr.mxu0 0.0
  %880 = vmatpush1.msra.mxu0 %v9
  %881 = vmatprep.subr.mxu0 0.0
  %882 = vmatpush1.msra.mxu0 0.0
  %883 = vmatprep.subr.mxu0 0.0
  %884 = vmatpush1.msra.mxu0 0.0
  %885 = vmatprep.subr.mxu0 0.0
  %886 = vmatpush1.msra.mxu0 0.0
  %887 = vmatprep.subr.mxu0 0.0
  %888 = vmatpush1.msra.mxu0 0.0
  %889 = vmatprep.subr.mxu0 0.0
  %890 = vmatpush1.msra.mxu0 0.0
  %891 = vmatprep.subr.mxu0 0.0
  %892 = vmatpush1.msra.mxu0 0.0
  %893 = vmatprep.subr.mxu0 0.0
  %894 = vmatpush1.msra.mxu0 0.0
  %895 = vmatprep.subr.mxu0 0.0
  %896 = vmatpush1.msra.mxu0 0.0
  %897 = vmatprep.subr.mxu0 0.0
  %898 = vmatpush1.msra.mxu0 0.0
  %899 = vmatprep.subr.mxu0 0.0
  %900 = vmatpush1.msra.mxu0 0.0
  %901 = vmatprep.subr.mxu0 0.0
  %902 = vmatpush1.msra.mxu0 0.0
  %903 = vmatprep.subr.mxu0 0.0
  %904 = vmatpush1.msra.mxu0 0.0
  %905 = vmatprep.subr.mxu0 0.0
  %906 = vmatpush1.msra.mxu0 0.0
  %907 = vmatprep.subr.mxu0 0.0
  %908 = vmatpush1.msra.mxu0 0.0
  %909 = vmatprep.subr.mxu0 0.0
  %910 = vmatpush1.msra.mxu0 0.0
  %911 = vmatprep.subr.mxu0 0.0
  %912 = vmatpush1.msra.mxu0 0.0
  %913 = vmatprep.subr.mxu0 0.0
  %914 = vmatpush1.msra.mxu0 0.0
  %915 = vmatprep.subr.mxu0 0.0
  %916 = vmatpush1.msra.mxu0 0.0
  %917 = vmatprep.subr.mxu0 0.0
  %918 = vmatpush1.msra.mxu0 0.0
  %919 = vmatprep.subr.mxu0 0.0
  %920 = vmatpush1.msra.mxu0 0.0
  %921 = vmatprep.subr.mxu0 0.0
  %922 = vmatpush1.msra.mxu0 0.0
  %923 = vmatprep.subr.mxu0 0.0
  %924 = vmatpush1.msra.mxu0 0.0
  %925 = vmatprep.subr.mxu0 0.0
  %926 = vmatpush1.msra.mxu0 0.0
  %927 = vmatprep.subr.mxu0 0.0
  %928 = vmatpush1.msra.mxu0 0.0
  %929 = vmatprep.subr.mxu0 0.0
  %930 = vmatpush1.msra.mxu0 0.0
  %931 = vmatprep.subr.mxu0 0.0
  %932 = vmatpush1.msra.mxu0 0.0
  %933 = vmatprep.subr.mxu0 0.0
  %934 = vmatpush1.msra.mxu0 0.0
  %935 = vmatprep.subr.mxu0 0.0
  %936 = vmatpush1.msra.mxu0 0.0
  %937 = vmatprep.subr.mxu0 0.0
  %938 = vmatpush1.msra.mxu0 0.0
  %939 = vmatprep.subr.mxu0 0.0
  %940 = vmatpush1.msra.mxu0 0.0
  %941 = vmatprep.mubr.f32.mxu0 0.0
  %942 = vmatmul.mubr.f32.gmra.mrb[0].mxu0 %v875
  %v943 = vpop.f32.mrb[0].mxu0
  %v944 = vadd.f32 0.0, %v943
  %v945 = vpop.f32.mrb[0].mxu0
  %946 = vdwg.mxu0
  %v947 = vadd.f32 %v870, %v944
  %v948 = vld [vmem:[%s0 + $0x138] sm:$0xff]
  %950 = vset.pattern.permute.xlu0 0
  %951 = vperm.xlu0 %950, %v948
  %v952 = vpop.permute.xlu0 %951
  %v954 = vadd.f32 %v947, %v952
  %vm955 = vcmask 15360
  %956 = vst.msk [vmem:[%s1] sm:$0xff] %vm955, %v783
  %957 = vst.msk [vmem:[%s1 + $0x8] sm:$0xff] %vm955, %v788
  %958 = vst.msk [vmem:[%s1 + $0x10] sm:$0xff] %vm955, %v954
  // Predicated region
  $region6: #{mixed_net_forward.1} parent=0 // pred_check
    _
  $region7: #{mixed_net_forward.1} parent=0 // pred_check_branch
    %960 = sbr.rel (0) target = $region9
  $region8: #{mixed_net_forward.1} parent=0 // pred_region
    _
  $region9: #{mixed_net_forward.1} parent=0 // pred_fallthru
    _
  // Predicated region
  $region10: #{mixed_net_forward.1} parent=0 // pred_check
    _
  $region11: #{mixed_net_forward.1} parent=0 // pred_check_branch
    %962 = sbr.rel (0) target = $region13
  $region12: #{mixed_net_forward.1} parent=0 // pred_region
    _
  $region13: #{mixed_net_forward.1} parent=0 // pred_fallthru
    _

</llo_original>
